<compile_context>
chip_gen: v5e
topology: v5e:2x2
jax: 0.10.0
libtpu: 0.0.40
codegen_flags: <defaults>
</compile_context>

<pallas_src>
import jax
import jax.numpy as jnp
from jax.experimental import pallas as pl
from jax.experimental.pallas import tpu as pltpu


# ----------------------------------------------------------------------------
# helpers
# ----------------------------------------------------------------------------

def _round_up(n, m):
    return ((n + m - 1) // m) * m


def _pick_tile(dim, max_tile):
    """Largest multiple of 128 that divides `dim` (a multiple of 128), <= max_tile."""
    best = 128
    t = 128
    while t <= min(dim, max_tile):
        if dim % t == 0:
            best = t
        t += 128
    return best


def _tpu_vmem_capacity():
    """Per-core VMEM capacity in bytes; conservative (v7x-sized) fallback."""
    try:
        info = pltpu.get_tpu_info()
        cap = int(getattr(info, "vmem_capacity_bytes", 0) or 0)
        if cap > 0:
            return cap
    except Exception:
        pass
    return 64 * 2**20


# ----------------------------------------------------------------------------
# Pallas kernels:  out = leaky_relu((G @ x + x) @ W + b, 0.2)
#   G tile:   (tm, tk) bf16, streamed from HBM exactly once
#   x:        VMEM-resident (Np, Cp) bf16 (resident kernels), or streamed
#             (tk, Cp) matmul block + (tm, Cp) residual rows (stream kernels)
#   W:        (Cp, Fp) bf16 (already transposed), grid-invariant in VMEM
#   b:        (1, Fp)  f32, grid-invariant
#   out:      (tm, Fp) block in the input dtype
# ----------------------------------------------------------------------------

def _fc_leaky_store(m_f32, w_ref, b_ref, o_ref):
    """Fused epilogue: y = m @ W + b ; leaky_relu(y, 0.2) -> output block."""
    y = jnp.dot(m_f32.astype(w_ref.dtype), w_ref[...],
                preferred_element_type=jnp.float32) + b_ref[...]
    o_ref[...] = jnp.where(y >= 0.0, y, 0.2 * y).astype(o_ref.dtype)


def _hg_fc_res_acc(g_ref, x_ref, w_ref, b_ref, o_ref, acc_ref):
    """Resident-x, split reduction.  grid = (row_blocks, k_blocks), k last."""
    tm, tk = g_ref.shape
    i, k = pl.program_id(0), pl.program_id(1)

    @pl.when(k == 0)
    def _():
        acc_ref[...] = jnp.zeros_like(acc_ref)

    ks = pl.multiple_of(k * tk, tk)
    acc_ref[...] += jnp.dot(g_ref[...], x_ref[pl.ds(ks, tk), :],
                            preferred_element_type=jnp.float32)

    @pl.when(k == pl.num_programs(1) - 1)
    def _():
        rs = pl.multiple_of(i * tm, tm)
        m = acc_ref[...] + x_ref[pl.ds(rs, tm), :].astype(jnp.float32)
        _fc_leaky_store(m, w_ref, b_ref, o_ref)


def _hg_fc_res_single(g_ref, x_ref, w_ref, b_ref, o_ref):
    """Resident-x, single reduction step (no accumulator round-trip)."""
    tm = g_ref.shape[0]
    i = pl.program_id(0)
    acc = jnp.dot(g_ref[...], x_ref[...], preferred_element_type=jnp.float32)
    rs = pl.multiple_of(i * tm, tm)
    m = acc + x_ref[pl.ds(rs, tm), :].astype(jnp.float32)
    _fc_leaky_store(m, w_ref, b_ref, o_ref)


def _hg_fc_stream_acc(g_ref, x_ref, r_ref, w_ref, b_ref, o_ref, acc_ref):
    """Streamed-x fallback (very large N): x k-block + residual rows via BlockSpec."""
    k = pl.program_id(1)

    @pl.when(k == 0)
    def _():
        acc_ref[...] = jnp.zeros_like(acc_ref)

    acc_ref[...] += jnp.dot(g_ref[...], x_ref[...],
                            preferred_element_type=jnp.float32)

    @pl.when(k == pl.num_programs(1) - 1)
    def _():
        m = acc_ref[...] + r_ref[...].astype(jnp.float32)
        _fc_leaky_store(m, w_ref, b_ref, o_ref)


def _hg_fc_stream_single(g_ref, x_ref, r_ref, w_ref, b_ref, o_ref):
    m = (jnp.dot(g_ref[...], x_ref[...], preferred_element_type=jnp.float32)
         + r_ref[...].astype(jnp.float32))
    _fc_leaky_store(m, w_ref, b_ref, o_ref)


# ----------------------------------------------------------------------------
# wrappers
# ----------------------------------------------------------------------------

def prepare_G(G, compute_dtype=jnp.bfloat16):
    """Pad G to a multiple of 128 and cast to the bf16 MXU dtype ONCE.

    Reuse the result for every hg_conv_fc call (both conv layers, and ideally
    across forwards) so the dominant HBM stream is only the bf16 G itself.
    """
    assert G.shape[0] == G.shape[1], "G must be square"
    N = G.shape[0]
    Np = _round_up(N, 128)
    Gp = jnp.pad(G, ((0, Np - N), (0, Np - N))).astype(compute_dtype)
    return Gp, N


def hg_conv_fc(Gp, n, x, w, b, *, max_tm=None, max_tk=None,
               force_x_resident=None, g_buffers=2):
    """leaky_relu((G @ x + x) @ w.T + b, 0.2) in a single Pallas kernel.

    Gp: (Np, Np) bf16 from prepare_G.  x: (n, C).  w: (F, C).  b: (F,).
    bf16 MXU operands, f32 accumulation; returns (n, F) in x.dtype.
    """
    Np = Gp.shape[0]
    assert Gp.shape == (Np, Np) and Np % 128 == 0
    assert x.shape[0] == n and n <= Np
    C = x.shape[1]
    F, C2 = w.shape
    assert C2 == C and b.shape == (F,)

    Cp = _round_up(C, 128)
    Fp = _round_up(F, 128)
    out_dtype = x.dtype
    compute_dtype = Gp.dtype
    in_bytes = jnp.dtype(compute_dtype).itemsize

    # --- generation-aware VMEM budget & tile caps ---------------------------
    cap = _tpu_vmem_capacity()
    dual_tc = cap <= 80 * 2**20              # v7x-class: 64 MiB/TC, 2 TCs/chip
    if dual_tc:
        budget, vmem_cap = 44 * 2**20, 52 * 2**20    # leave Mosaic headroom
    else:                                    # v5e / v6e: 128 MiB, single TC
        budget, vmem_cap = 96 * 2**20, 100 * 2**20
    max_tm = 512 if max_tm is None else max_tm
    max_tk = (2048 if dual_tc else 4096) if max_tk is None else max_tk

    # --- tile selection ------------------------------------------------------
    tm = _pick_tile(Np, max_tm)
    # Only force a >=2-way row split where a second TensorCore exists to use
    # it, and only when the problem is big enough to amortize the extra steps.
    if dual_tc and Np >= 512 and Np // tm < 2:
        tm = _pick_tile(Np, Np // 2)
    tk = _pick_tile(Np, max_tk)

    # Keep x VMEM-resident (fetched from HBM once per layer) unless it would
    # eat the budget; fall back to streaming it per k-block for very large N.
    if force_x_resident is None:
        x_resident = 2 * Np * Cp * in_bytes <= budget // 2
    else:
        x_resident = force_x_resident

    def vmem_est(tm_, tk_):
        g = max(g_buffers, 2) * tm_ * tk_ * in_bytes
        if x_resident:
            xb = 2 * Np * Cp * in_bytes
        else:
            xb = 2 * tk_ * Cp * in_bytes + 2 * tm_ * Cp * in_bytes
        wb = 2 * Cp * Fp * in_bytes + 2 * Fp * 4
        ob = 2 * tm_ * Fp * 4
        return g + xb + wb + ob + tm_ * Cp * 4          # + f32 accumulator

    while vmem_est(tm, tk) > budget and tk > 128:
        tk = _pick_tile(Np, tk - 128)
    while vmem_est(tm, tk) > budget and tm > 128:
        tm = _pick_tile(Np, tm - 128)

    nm, nk = Np // tm, Np // tk

    # --- pad operands (zero padding is inert in the matmul; rows/cols beyond
    #     (n, F) are sliced off at the end) ----------------------------------
    xp = jnp.pad(x, ((0, Np - n), (0, Cp - C))).astype(compute_dtype)
    wp = jnp.pad(w.T, ((0, Cp - C), (0, Fp - F))).astype(compute_dtype)
    bp = jnp.pad(b.astype(jnp.float32), (0, Fp - F)).reshape(1, Fp)

    g_kwargs = {}
    if g_buffers != 2:                       # optional deeper pipelining knob
        g_kwargs["pipeline_mode"] = pl.Buffered(g_buffers)
    g_spec = pl.BlockSpec((tm, tk), lambda i, k: (i, k), **g_kwargs)
    w_spec = pl.BlockSpec((Cp, Fp), lambda i, k: (0, 0))
    b_spec = pl.BlockSpec((1, Fp), lambda i, k: (0, 0))

    if x_resident:
        in_specs = [g_spec,
                    pl.BlockSpec((Np, Cp), lambda i, k: (0, 0)),   # x, VMEM-resident
                    w_spec, b_spec]
        operands = (Gp, xp, wp, bp)
        kernel = _hg_fc_res_single if nk == 1 else _hg_fc_res_acc
    else:
        in_specs = [g_spec,
                    pl.BlockSpec((tk, Cp), lambda i, k: (k, 0)),   # x, matmul operand
                    pl.BlockSpec((tm, Cp), lambda i, k: (i, 0)),   # x, residual rows
                    w_spec, b_spec]
        operands = (Gp, xp, xp, wp, bp)
        kernel = _hg_fc_stream_single if nk == 1 else _hg_fc_stream_acc

    scratch = [] if nk == 1 else [pltpu.VMEM((tm, Cp), jnp.float32)]

    est = vmem_est(tm, tk)
    vmem_limit = int(min(vmem_cap, max(32 * 2**20, est + 16 * 2**20)))

    out = pl.pallas_call(
        kernel,
        out_shape=jax.ShapeDtypeStruct((Np, Fp), out_dtype),
        grid_spec=pltpu.PrefetchScalarGridSpec(
            num_scalar_prefetch=0,
            grid=(nm, nk),
            in_specs=in_specs,
            out_specs=pl.BlockSpec((tm, Fp), lambda i, k: (i, 0)),
            scratch_shapes=scratch,
        ),
        compiler_params=pltpu.CompilerParams(
            dimension_semantics=("parallel", "arbitrary"),
            vmem_limit_bytes=vmem_limit,
        ),
        cost_estimate=pl.CostEstimate(
            flops=2 * Np * Np * Cp + 2 * Np * Cp * Fp,
            transcendentals=0,
            bytes_accessed=(Np * Np * in_bytes              # G (dominant stream)
                            + Np * Cp * in_bytes            # x (read once)
                            + Cp * Fp * in_bytes + Fp * 4   # W, b
                            + Np * Fp * jnp.dtype(out_dtype).itemsize),
        ),
    )(*operands)

    return out[:n, :F]


def _hg_fc_ref(G, x, w, b):
    """Pure-JAX reference with matching bf16-operand / f32-accumulate semantics."""
    xb = x.astype(jnp.bfloat16)
    m = jnp.dot(G.astype(jnp.bfloat16), xb,
                preferred_element_type=jnp.float32) + xb.astype(jnp.float32)
    y = jnp.dot(m.astype(jnp.bfloat16), w.T.astype(jnp.bfloat16),
                preferred_element_type=jnp.float32) + b.astype(jnp.float32)
    return jnp.where(y >= 0.0, y, 0.2 * y).astype(x.dtype)


# ----------------------------------------------------------------------------
# DHCF_2 forward
# ----------------------------------------------------------------------------

def dhcf2_forward(params, idx, G, *, use_pallas=True):
    x = jnp.take(params["embed"], idx, axis=0)            # embedding lookup
    # TODO(synk): F.dropout(p=0.1) in the torch module is stochastic (functional
    # default training=True); treated here as inference-mode identity.
    if use_pallas:
        Gp, n = prepare_G(G)                               # pad + bf16 cast ONCE
        x1 = hg_conv_fc(Gp, n, x, params["fc1_w"], params["fc1_b"])
        x2 = hg_conv_fc(Gp, n, x1, params["fc2_w"], params["fc2_b"])
    else:
        x1 = _hg_fc_ref(G, x, params["fc1_w"], params["fc1_b"])
        x2 = _hg_fc_ref(G, x1, params["fc2_w"], params["fc2_b"])
    return jnp.concatenate([x, x1, x2], axis=1)


if __name__ == "__main__":
    # Small deterministic problem: 256 nodes, vocab 300, hid 128, item-emb 64.
    N, in_ch, hid_ch, i_emb = 256, 300, 128, 64
    key = jax.random.PRNGKey(0)
    k_idx, k_g, k_e, k_w1, k_w2, k_g2 = jax.random.split(key, 6)

    idx = jax.random.randint(k_idx, (N,), 0, in_ch)
    G = jax.random.normal(k_g, (N, N), dtype=jnp.float32) / jnp.sqrt(N)

    def xavier(k, shape):
        fan_out, fan_in = shape
        a = (6.0 / (fan_in + fan_out)) ** 0.5
        return jax.random.uniform(k, shape, jnp.float32, -a, a)

    params = {
        "embed": xavier(k_e, (in_ch, hid_ch)),
        "fc1_w": xavier(k_w1, (hid_ch, hid_ch)),
        "fc1_b": jnp.zeros((hid_ch,), jnp.float32),
        "fc2_w": xavier(k_w2, (i_emb, hid_ch)),
        "fc2_b": jnp.zeros((i_emb,), jnp.float32),
    }

    fwd = jax.jit(dhcf2_forward, static_argnames=("use_pallas",))
    out = jax.block_until_ready(fwd(params, idx, G, use_pallas=True))
    ref = jax.block_until_ready(fwd(params, idx, G, use_pallas=False))

    assert out.shape == (N, 2 * hid_ch + i_emb)
    err = float(jnp.max(jnp.abs(out - ref)))
    assert jnp.allclose(out, ref, atol=2e-3, rtol=2e-3), f"forward mismatch {err}"

    # Exercise the other kernel variants (split reduction, streamed-x fallback).
    x0 = jnp.take(params["embed"], idx, axis=0)
    Gp, n = prepare_G(G)
    ref1 = _hg_fc_ref(G, x0, params["fc1_w"], params["fc1_b"])
    res_acc = hg_conv_fc(Gp, n, x0, params["fc1_w"], params["fc1_b"],
                         max_tm=128, max_tk=128)
    str_acc = hg_conv_fc(Gp, n, x0, params["fc1_w"], params["fc1_b"],
                         max_tm=128, max_tk=128, force_x_resident=False)
    str_one = hg_conv_fc(Gp, n, x0, params["fc1_w"], params["fc1_b"],
                         force_x_resident=False)
    jax.block_until_ready((res_acc, str_acc, str_one))
    for cand in (res_acc, str_acc, str_one):
        assert jnp.allclose(cand, ref1, atol=2e-3, rtol=2e-3), "variant mismatch"

    # Non-multiple-of-128 node count exercises the padding path.
    N2 = 200
    G2 = jax.random.normal(k_g2, (N2, N2), dtype=jnp.float32) / jnp.sqrt(N2)
    x2in = x0[:N2]
    Gp2, n2 = prepare_G(G2)
    pad_out = jax.block_until_ready(
        hg_conv_fc(Gp2, n2, x2in, params["fc1_w"], params["fc1_b"]))
    pad_ref = _hg_fc_ref(G2, x2in, params["fc1_w"], params["fc1_b"])
    assert pad_out.shape == (N2, hid_ch)
    assert jnp.allclose(pad_out, pad_ref, atol=2e-3, rtol=2e-3), "padding mismatch"

    print("KERNEL_OK")
</pallas_src>

<mosaic_0001>
module attributes {stable_mosaic.version = 11 : i64} {
  func.func @_hg_fc_res_single(%arg0: i32, %arg1: i32, %arg2: memref<256x256xbf16, #tpu.memory_space<vmem>>, %arg3: memref<256x128xbf16, #tpu.memory_space<vmem>>, %arg4: memref<128x128xbf16, #tpu.memory_space<vmem>>, %arg5: memref<1x128xf32, #tpu.memory_space<vmem>>, %arg6: memref<256x128xf32, #tpu.memory_space<vmem>>) attributes {dimension_semantics = [#tpu.dimension_semantics<parallel>, #tpu.dimension_semantics<arbitrary>], iteration_bounds = array<i64: 1, 1>, scalar_prefetch = 0 : i64, scratch_operands = 0 : i64, tpu.core_type = #tpu.core_type<tc>, window_params = [{transform_indices = @transform_0, window_bounds = array<i64: 256, 256>}, {pipeline_mode = #tpu.pipeline_mode<synchronous>, transform_indices = @transform_1, window_bounds = array<i64: 256, 128>}, {pipeline_mode = #tpu.pipeline_mode<synchronous>, transform_indices = @transform_2, window_bounds = array<i64: 128, 128>}, {pipeline_mode = #tpu.pipeline_mode<synchronous>, transform_indices = @transform_3, window_bounds = array<i64: 1, 128>}, {transform_indices = @transform_4, window_bounds = array<i64: 256, 128>}]} {
    %c0 = arith.constant 0 : index
    %c0_0 = arith.constant 0 : index
    %0 = vector.load %arg2[%c0, %c0_0] : memref<256x256xbf16, #tpu.memory_space<vmem>>, vector<256x256xbf16>
    %c0_1 = arith.constant 0 : index
    %c0_2 = arith.constant 0 : index
    %1 = vector.load %arg3[%c0_1, %c0_2] : memref<256x128xbf16, #tpu.memory_space<vmem>>, vector<256x128xbf16>
    %cst = arith.constant dense<0.000000e+00> : vector<256x128xf32>
    %2 = tpu.matmul %0, %1, %cst {dimension_numbers = #tpu.dot_dimension_numbers<[1], [0], [0], [1], [0, 0, 1, 1], [], []>} : vector<256x256xbf16>, vector<256x128xbf16>, vector<256x128xf32> -> vector<256x128xf32>
    %c256_i32 = arith.constant 256 : i32
    %3 = arith.muli %arg0, %c256_i32 : i32
    %4 = tpu.assume_multiple %3, 256 : i32
    %5 = arith.index_cast %4 : i32 to index
    %c0_3 = arith.constant 0 : index
    %6 = vector.load %arg3[%5, %c0_3] : memref<256x128xbf16, #tpu.memory_space<vmem>>, vector<256x128xbf16>
    %7 = arith.extf %6 : vector<256x128xbf16> to vector<256x128xf32>
    %8 = arith.addf %2, %7 : vector<256x128xf32>
    %9 = arith.truncf %8 : vector<256x128xf32> to vector<256x128xbf16>
    %c0_4 = arith.constant 0 : index
    %c0_5 = arith.constant 0 : index
    %10 = vector.load %arg4[%c0_4, %c0_5] : memref<128x128xbf16, #tpu.memory_space<vmem>>, vector<128x128xbf16>
    %cst_6 = arith.constant dense<0.000000e+00> : vector<256x128xf32>
    %11 = tpu.matmul %9, %10, %cst_6 {dimension_numbers = #tpu.dot_dimension_numbers<[1], [0], [0], [1], [0, 0, 1, 1], [], []>} : vector<256x128xbf16>, vector<128x128xbf16>, vector<256x128xf32> -> vector<256x128xf32>
    %c0_7 = arith.constant 0 : index
    %c0_8 = arith.constant 0 : index
    %12 = vector.load %arg5[%c0_7, %c0_8] : memref<1x128xf32, #tpu.memory_space<vmem>>, vector<1x128xf32>
    %13 = vector.broadcast %12 : vector<1x128xf32> to vector<256x128xf32>
    %14 = arith.addf %11, %13 : vector<256x128xf32>
    %cst_9 = arith.constant 0.000000e+00 : f32
    %15 = vector.broadcast %cst_9 : f32 to vector<256x128xf32>
    %16 = arith.cmpf oge, %14, %15 : vector<256x128xf32>
    %cst_10 = arith.constant 2.000000e-01 : f32
    %17 = vector.broadcast %cst_10 : f32 to vector<256x128xf32>
    %18 = arith.mulf %17, %14 : vector<256x128xf32>
    %19 = arith.select %16, %14, %18 : vector<256x128xi1>, vector<256x128xf32>
    %c0_11 = arith.constant 0 : index
    %c0_12 = arith.constant 0 : index
    %20 = vector.load %arg6[%c0_11, %c0_12] : memref<256x128xf32, #tpu.memory_space<vmem>>, vector<256x128xf32>
    tpu.vector_store %arg6[%c0_11, %c0_12], %19 {strides = array<i32>} : memref<256x128xf32, #tpu.memory_space<vmem>>, vector<256x128xf32>,
    return
  }
  func.func @transform_0(%arg0: i32, %arg1: i32) -> (i32, i32) {
    %c0_i32 = arith.constant 0 : i32
    return %arg0, %arg1 : i32, i32
  }
  func.func @transform_1(%arg0: i32, %arg1: i32) -> (i32, i32) {
    %c0_i32 = arith.constant 0 : i32
    %c0_i32_0 = arith.constant 0 : i32
    %c0_i32_1 = arith.constant 0 : i32
    return %c0_i32, %c0_i32_0 : i32, i32
  }
  func.func @transform_2(%arg0: i32, %arg1: i32) -> (i32, i32) {
    %c0_i32 = arith.constant 0 : i32
    %c0_i32_0 = arith.constant 0 : i32
    %c0_i32_1 = arith.constant 0 : i32
    return %c0_i32, %c0_i32_0 : i32, i32
  }
  func.func @transform_3(%arg0: i32, %arg1: i32) -> (i32, i32) {
    %c0_i32 = arith.constant 0 : i32
    %c0_i32_0 = arith.constant 0 : i32
    %c0_i32_1 = arith.constant 0 : i32
    return %c0_i32, %c0_i32_0 : i32, i32
  }
  func.func @transform_4(%arg0: i32, %arg1: i32) -> (i32, i32) {
    %c0_i32 = arith.constant 0 : i32
    %c0_i32_0 = arith.constant 0 : i32
    return %arg0, %c0_i32 : i32, i32
  }
}

</mosaic_0001>

<llo_original>
// kernel: dhcf2_forward.2
$region0: #{dhcf2_forward.2}
  #allocation0 [shape = 'u32[]', space=smem, size = 0x4, offset = 0x4, fixed_abs, tag = 'smem constant byte address 0x4 - core index']
  #allocation1 [shape = 'u32[72,128]{1,0:T(1,128)}', space=vmem, size = 0x9000, scoped, tag = 'internal scratch']
  %s0 = inlined_call_operand.vmem [shape: bf16[256,256], index: 0, kind: input, shape index: {}]
  %s1 = inlined_call_operand.vmem [shape: bf16[256,128], index: 1, kind: input, shape index: {}]
  %s2 = inlined_call_operand.vmem [shape: bf16[128,128], index: 2, kind: input, shape index: {}]
  %s3 = inlined_call_operand.vmem [shape: f32[1,128], index: 3, kind: input, shape index: {}]
  %s4 = inlined_call_operand.vmem [shape: f32[256,128], index: 4, kind: output, shape index: {}]
  %s5 = sld [smem:[#allocation0]]
  $region26: #{dhcf2_forward.2} parent=0
    _
  %s7 = ssub.s32 1, %s5
  %s8 = scalar_select 0, %s7, %s5
  // Predicated region
  $region2: #{dhcf2_forward.2} parent=0 // pred_check
    _
  $region3: #{dhcf2_forward.2} parent=0 // pred_check_branch
    %10 = sbr.rel (0) target = $region5
  $region4: #{dhcf2_forward.2} parent=0 // pred_region
    _
  $region5: #{dhcf2_forward.2} parent=0 // pred_fallthru
    _
  // Predicated region
  $region6: #{dhcf2_forward.2} parent=0 // pred_check
    _
  $region7: #{dhcf2_forward.2} parent=0 // pred_check_branch
    %12 = sbr.rel (0) target = $region9
  $region8: #{dhcf2_forward.2} parent=0 // pred_region
    _
  $region9: #{dhcf2_forward.2} parent=0 // pred_fallthru
    _
  // Predicated region
  $region10: #{dhcf2_forward.2} parent=0 // pred_check
    _
  $region11: #{dhcf2_forward.2} parent=0 // pred_check_branch
    %14 = sbr.rel (0) target = $region13
  $region12: #{dhcf2_forward.2} parent=0 // pred_region
    _
  $region13: #{dhcf2_forward.2} parent=0 // pred_fallthru
    _
  // Predicated region
  $region14: #{dhcf2_forward.2} parent=0 // pred_check
    _
  $region15: #{dhcf2_forward.2} parent=0 // pred_check_branch
    %16 = sbr.rel (0) target = $region17
  $region16: #{dhcf2_forward.2} parent=0 // pred_region
    _
  $region17: #{dhcf2_forward.2} parent=0 // pred_fallthru
    _
  %v17 = vld [vmem:[%s0] sm:$0xff]
  %v18 = vld [vmem:[%s0 + $0x8] sm:$0xff]
  %v19 = vld [vmem:[%s0 + $0x10] sm:$0xff]
  %v20 = vld [vmem:[%s0 + $0x18] sm:$0xff]
  %v21 = vld [vmem:[%s0 + $0x20] sm:$0xff]
  %v22 = vld [vmem:[%s0 + $0x28] sm:$0xff]
  %v23 = vld [vmem:[%s0 + $0x30] sm:$0xff]
  %v24 = vld [vmem:[%s0 + $0x38] sm:$0xff]
  %v25 = vld [vmem:[%s0 + $0x40] sm:$0xff]
  %v26 = vld [vmem:[%s0 + $0x48] sm:$0xff]
  %v27 = vld [vmem:[%s0 + $0x50] sm:$0xff]
  %v28 = vld [vmem:[%s0 + $0x58] sm:$0xff]
  %v29 = vld [vmem:[%s0 + $0x60] sm:$0xff]
  %v30 = vld [vmem:[%s0 + $0x68] sm:$0xff]
  %v31 = vld [vmem:[%s0 + $0x70] sm:$0xff]
  %v32 = vld [vmem:[%s0 + $0x78] sm:$0xff]
  %v33 = vld [vmem:[%s0 + $0x80] sm:$0xff]
  %v34 = vld [vmem:[%s0 + $0x88] sm:$0xff]
  %v35 = vld [vmem:[%s0 + $0x90] sm:$0xff]
  %v36 = vld [vmem:[%s0 + $0x98] sm:$0xff]
  %v37 = vld [vmem:[%s0 + $0xa0] sm:$0xff]
  %v38 = vld [vmem:[%s0 + $0xa8] sm:$0xff]
  %v39 = vld [vmem:[%s0 + $0xb0] sm:$0xff]
  %v40 = vld [vmem:[%s0 + $0xb8] sm:$0xff]
  %v41 = vld [vmem:[%s0 + $0xc0] sm:$0xff]
  %v42 = vld [vmem:[%s0 + $0xc8] sm:$0xff]
  %v43 = vld [vmem:[%s0 + $0xd0] sm:$0xff]
  %v44 = vld [vmem:[%s0 + $0xd8] sm:$0xff]
  %v45 = vld [vmem:[%s0 + $0xe0] sm:$0xff]
  %v46 = vld [vmem:[%s0 + $0xe8] sm:$0xff]
  %v47 = vld [vmem:[%s0 + $0xf0] sm:$0xff]
  %v48 = vld [vmem:[%s0 + $0xf8] sm:$0xff]
  %v49 = vld [vmem:[%s1] sm:$0xf]
  %v50 = vld [vmem:[%s1 + $0x4] sm:$0xf]
  %v51 = vld [vmem:[%s1 + $0x8] sm:$0xf]
  %v52 = vld [vmem:[%s1 + $0xc] sm:$0xf]
  %v53 = vld [vmem:[%s1 + $0x10] sm:$0xf]
  %v54 = vld [vmem:[%s1 + $0x14] sm:$0xf]
  %v55 = vld [vmem:[%s1 + $0x18] sm:$0xf]
  %v56 = vld [vmem:[%s1 + $0x1c] sm:$0xf]
  %v57 = vld [vmem:[%s1 + $0x20] sm:$0xf]
  %v58 = vld [vmem:[%s1 + $0x24] sm:$0xf]
  %v59 = vld [vmem:[%s1 + $0x28] sm:$0xf]
  %v60 = vld [vmem:[%s1 + $0x2c] sm:$0xf]
  %v61 = vld [vmem:[%s1 + $0x30] sm:$0xf]
  %v62 = vld [vmem:[%s1 + $0x34] sm:$0xf]
  %v63 = vld [vmem:[%s1 + $0x38] sm:$0xf]
  %v64 = vld [vmem:[%s1 + $0x3c] sm:$0xf]
  %v65 = vld [vmem:[%s1 + $0x40] sm:$0xf]
  %v66 = vld [vmem:[%s1 + $0x44] sm:$0xf]
  %v67 = vld [vmem:[%s1 + $0x48] sm:$0xf]
  %v68 = vld [vmem:[%s1 + $0x4c] sm:$0xf]
  %v69 = vld [vmem:[%s1 + $0x50] sm:$0xf]
  %v70 = vld [vmem:[%s1 + $0x54] sm:$0xf]
  %v71 = vld [vmem:[%s1 + $0x58] sm:$0xf]
  %v72 = vld [vmem:[%s1 + $0x5c] sm:$0xf]
  %v73 = vld [vmem:[%s1 + $0x60] sm:$0xf]
  %v74 = vld [vmem:[%s1 + $0x64] sm:$0xf]
  %v75 = vld [vmem:[%s1 + $0x68] sm:$0xf]
  %v76 = vld [vmem:[%s1 + $0x6c] sm:$0xf]
  %v77 = vld [vmem:[%s1 + $0x70] sm:$0xf]
  %v78 = vld [vmem:[%s1 + $0x74] sm:$0xf]
  %v79 = vld [vmem:[%s1 + $0x78] sm:$0xf]
  %v80 = vld [vmem:[%s1 + $0x7c] sm:$0xf]
  %s81 = smul.u32 0, 256
  %s82 = sshra.s32 %s81, 3
  %s83 = sand.u32 %s81, 7
  %s84 = smul.addr %s82, 4
  %s85 = scalar_lea.vmem %s1, %s84
  %v86 = vld [vmem:[%s85] sm:$0xf]
  %v87 = vld [vmem:[%s85 + $0x4] sm:$0xf]
  %v88 = vld [vmem:[%s85 + $0x8] sm:$0xf]
  %v89 = vld [vmem:[%s85 + $0xc] sm:$0xf]
  %v90 = vld [vmem:[%s85 + $0x10] sm:$0xf]
  %v91 = vld [vmem:[%s85 + $0x14] sm:$0xf]
  %v92 = vld [vmem:[%s85 + $0x18] sm:$0xf]
  %v93 = vld [vmem:[%s85 + $0x1c] sm:$0xf]
  %v94 = vld [vmem:[%s85 + $0x20] sm:$0xf]
  %v95 = vld [vmem:[%s85 + $0x24] sm:$0xf]
  %v96 = vld [vmem:[%s85 + $0x28] sm:$0xf]
  %v97 = vld [vmem:[%s85 + $0x2c] sm:$0xf]
  %v98 = vld [vmem:[%s85 + $0x30] sm:$0xf]
  %v99 = vld [vmem:[%s85 + $0x34] sm:$0xf]
  %v100 = vld [vmem:[%s85 + $0x38] sm:$0xf]
  %v101 = vld [vmem:[%s85 + $0x3c] sm:$0xf]
  %v102 = vld [vmem:[%s85 + $0x40] sm:$0xf]
  %v103 = vld [vmem:[%s85 + $0x44] sm:$0xf]
  %v104 = vld [vmem:[%s85 + $0x48] sm:$0xf]
  %v105 = vld [vmem:[%s85 + $0x4c] sm:$0xf]
  %v106 = vld [vmem:[%s85 + $0x50] sm:$0xf]
  %v107 = vld [vmem:[%s85 + $0x54] sm:$0xf]
  %v108 = vld [vmem:[%s85 + $0x58] sm:$0xf]
  %v109 = vld [vmem:[%s85 + $0x5c] sm:$0xf]
  %v110 = vld [vmem:[%s85 + $0x60] sm:$0xf]
  %v111 = vld [vmem:[%s85 + $0x64] sm:$0xf]
  %v112 = vld [vmem:[%s85 + $0x68] sm:$0xf]
  %v113 = vld [vmem:[%s85 + $0x6c] sm:$0xf]
  %v114 = vld [vmem:[%s85 + $0x70] sm:$0xf]
  %v115 = vld [vmem:[%s85 + $0x74] sm:$0xf]
  %v116 = vld [vmem:[%s85 + $0x78] sm:$0xf]
  %v117 = vld [vmem:[%s85 + $0x7c] sm:$0xf]
  %v118 = vunpack.c.l.bf16 %v86
  %v119 = vunpack.c.l.bf16 %v87
  %v120 = vunpack.c.l.bf16 %v88
  %v121 = vunpack.c.l.bf16 %v89
  %v122 = vunpack.c.l.bf16 %v90
  %v123 = vunpack.c.l.bf16 %v91
  %v124 = vunpack.c.l.bf16 %v92
  %v125 = vunpack.c.l.bf16 %v93
  %v126 = vunpack.c.l.bf16 %v94
  %v127 = vunpack.c.l.bf16 %v95
  %v128 = vunpack.c.l.bf16 %v96
  %v129 = vunpack.c.l.bf16 %v97
  %v130 = vunpack.c.l.bf16 %v98
  %v131 = vunpack.c.l.bf16 %v99
  %v132 = vunpack.c.l.bf16 %v100
  %v133 = vunpack.c.l.bf16 %v101
  %v134 = vunpack.c.l.bf16 %v102
  %v135 = vunpack.c.l.bf16 %v103
  %v136 = vunpack.c.l.bf16 %v104
  %v137 = vunpack.c.l.bf16 %v105
  %v138 = vunpack.c.l.bf16 %v106
  %v139 = vunpack.c.l.bf16 %v107
  %v140 = vunpack.c.l.bf16 %v108
  %v141 = vunpack.c.l.bf16 %v109
  %v142 = vunpack.c.l.bf16 %v110
  %v143 = vunpack.c.l.bf16 %v111
  %v144 = vunpack.c.l.bf16 %v112
  %v145 = vunpack.c.l.bf16 %v113
  %v146 = vunpack.c.l.bf16 %v114
  %v147 = vunpack.c.l.bf16 %v115
  %v148 = vunpack.c.l.bf16 %v116
  %v149 = vunpack.c.l.bf16 %v117
  %v182 = vunpack.c.l.b16 %v17
  %v183 = vunpack.c.h.b16 %v17
  %v184 = vunpack.c.l.b16 %v18
  %v185 = vunpack.c.h.b16 %v18
  %v186 = vunpack.c.l.b16 %v19
  %v187 = vunpack.c.h.b16 %v19
  %v188 = vunpack.c.l.b16 %v20
  %v189 = vunpack.c.h.b16 %v20
  %v190 = vunpack.c.l.b16 %v21
  %v191 = vunpack.c.h.b16 %v21
  %v192 = vunpack.c.l.b16 %v22
  %v193 = vunpack.c.h.b16 %v22
  %v194 = vunpack.c.l.b16 %v23
  %v195 = vunpack.c.h.b16 %v23
  %v196 = vunpack.c.l.b16 %v24
  %v197 = vunpack.c.h.b16 %v24
  %v198 = vunpack.c.l.b16 %v25
  %v199 = vunpack.c.h.b16 %v25
  %v200 = vunpack.c.l.b16 %v26
  %v201 = vunpack.c.h.b16 %v26
  %v202 = vunpack.c.l.b16 %v27
  %v203 = vunpack.c.h.b16 %v27
  %v204 = vunpack.c.l.b16 %v28
  %v205 = vunpack.c.h.b16 %v28
  %v206 = vunpack.c.l.b16 %v29
  %v207 = vunpack.c.h.b16 %v29
  %v208 = vunpack.c.l.b16 %v30
  %v209 = vunpack.c.h.b16 %v30
  %v210 = vunpack.c.l.b16 %v31
  %v211 = vunpack.c.h.b16 %v31
  %v212 = vunpack.c.l.b16 %v32
  %v213 = vunpack.c.h.b16 %v32
  %v214 = vunpack.c.l.b16 %v33
  %v215 = vunpack.c.h.b16 %v33
  %v216 = vunpack.c.l.b16 %v34
  %v217 = vunpack.c.h.b16 %v34
  %v218 = vunpack.c.l.b16 %v35
  %v219 = vunpack.c.h.b16 %v35
  %v220 = vunpack.c.l.b16 %v36
  %v221 = vunpack.c.h.b16 %v36
  %v222 = vunpack.c.l.b16 %v37
  %v223 = vunpack.c.h.b16 %v37
  %v224 = vunpack.c.l.b16 %v38
  %v225 = vunpack.c.h.b16 %v38
  %v226 = vunpack.c.l.b16 %v39
  %v227 = vunpack.c.h.b16 %v39
  %v228 = vunpack.c.l.b16 %v40
  %v229 = vunpack.c.h.b16 %v40
  %v230 = vunpack.c.l.b16 %v41
  %v231 = vunpack.c.h.b16 %v41
  %v232 = vunpack.c.l.b16 %v42
  %v233 = vunpack.c.h.b16 %v42
  %v234 = vunpack.c.l.b16 %v43
  %v235 = vunpack.c.h.b16 %v43
  %v236 = vunpack.c.l.b16 %v44
  %v237 = vunpack.c.h.b16 %v44
  %v238 = vunpack.c.l.b16 %v45
  %v239 = vunpack.c.h.b16 %v45
  %v240 = vunpack.c.l.b16 %v46
  %v241 = vunpack.c.h.b16 %v46
  %v242 = vunpack.c.l.b16 %v47
  %v243 = vunpack.c.h.b16 %v47
  %v244 = vunpack.c.l.b16 %v48
  %v245 = vunpack.c.h.b16 %v48
  %v246 = vpack.c.b16 %v184, %v182
  %v247 = vpack.c.b16 %v185, %v183
  %v248 = vpack.c.b16 %v188, %v186
  %v249 = vpack.c.b16 %v189, %v187
  %v250 = vpack.c.b16 %v192, %v190
  %v251 = vpack.c.b16 %v193, %v191
  %v252 = vpack.c.b16 %v196, %v194
  %v253 = vpack.c.b16 %v197, %v195
  %v254 = vpack.c.b16 %v200, %v198
  %v255 = vpack.c.b16 %v201, %v199
  %v256 = vpack.c.b16 %v204, %v202
  %v257 = vpack.c.b16 %v205, %v203
  %v258 = vpack.c.b16 %v208, %v206
  %v259 = vpack.c.b16 %v209, %v207
  %v260 = vpack.c.b16 %v212, %v210
  %v261 = vpack.c.b16 %v213, %v211
  %v262 = vpack.c.b16 %v216, %v214
  %v263 = vpack.c.b16 %v217, %v215
  %v264 = vpack.c.b16 %v220, %v218
  %v265 = vpack.c.b16 %v221, %v219
  %v266 = vpack.c.b16 %v224, %v222
  %v267 = vpack.c.b16 %v225, %v223
  %v268 = vpack.c.b16 %v228, %v226
  %v269 = vpack.c.b16 %v229, %v227
  %v270 = vpack.c.b16 %v232, %v230
  %v271 = vpack.c.b16 %v233, %v231
  %v272 = vpack.c.b16 %v236, %v234
  %v273 = vpack.c.b16 %v237, %v235
  %v274 = vpack.c.b16 %v240, %v238
  %v275 = vpack.c.b16 %v241, %v239
  %v276 = vpack.c.b16 %v244, %v242
  %v277 = vpack.c.b16 %v245, %v243
  %v342 = vunpack.c.l.b16 %v49
  %v343 = vunpack.c.l.b16 %v50
  %v344 = vunpack.c.l.b16 %v51
  %v345 = vunpack.c.l.b16 %v52
  %v346 = vunpack.c.l.b16 %v53
  %v347 = vunpack.c.l.b16 %v54
  %v348 = vunpack.c.l.b16 %v55
  %v349 = vunpack.c.l.b16 %v56
  %v350 = vunpack.c.l.b16 %v57
  %v351 = vunpack.c.l.b16 %v58
  %v352 = vunpack.c.l.b16 %v59
  %v353 = vunpack.c.l.b16 %v60
  %v354 = vunpack.c.l.b16 %v61
  %v355 = vunpack.c.l.b16 %v62
  %v356 = vunpack.c.l.b16 %v63
  %v357 = vunpack.c.l.b16 %v64
  %v358 = vunpack.c.l.b16 %v65
  %v359 = vunpack.c.l.b16 %v66
  %v360 = vunpack.c.l.b16 %v67
  %v361 = vunpack.c.l.b16 %v68
  %v362 = vunpack.c.l.b16 %v69
  %v363 = vunpack.c.l.b16 %v70
  %v364 = vunpack.c.l.b16 %v71
  %v365 = vunpack.c.l.b16 %v72
  %v366 = vunpack.c.l.b16 %v73
  %v367 = vunpack.c.l.b16 %v74
  %v368 = vunpack.c.l.b16 %v75
  %v369 = vunpack.c.l.b16 %v76
  %v370 = vunpack.c.l.b16 %v77
  %v371 = vunpack.c.l.b16 %v78
  %v372 = vunpack.c.l.b16 %v79
  %v373 = vunpack.c.l.b16 %v80
  %v374 = vpack.c.b16 %v343, %v342
  %v375 = vpack.c.b16 %v345, %v344
  %v376 = vpack.c.b16 %v347, %v346
  %v377 = vpack.c.b16 %v349, %v348
  %v378 = vpack.c.b16 %v351, %v350
  %v379 = vpack.c.b16 %v353, %v352
  %v380 = vpack.c.b16 %v355, %v354
  %v381 = vpack.c.b16 %v357, %v356
  %v382 = vpack.c.b16 %v359, %v358
  %v383 = vpack.c.b16 %v361, %v360
  %v384 = vpack.c.b16 %v363, %v362
  %v385 = vpack.c.b16 %v365, %v364
  %v386 = vpack.c.b16 %v367, %v366
  %v387 = vpack.c.b16 %v369, %v368
  %v388 = vpack.c.b16 %v371, %v370
  %v389 = vpack.c.b16 %v373, %v372
  %406 = vmatpush.bf16.msra.mxu0 %v381
  %407 = vmatpush.bf16.msra.mxu0 %v380
  %408 = vmatpush.bf16.msra.mxu0 %v379
  %409 = vmatpush.bf16.msra.mxu0 %v378
  %410 = vmatpush.bf16.msra.mxu0 %v377
  %411 = vmatpush.bf16.msra.mxu0 %v376
  %412 = vmatpush.bf16.msra.mxu0 %v375
  %413 = vmatpush.bf16.msra.mxu0 %v374
  %414 = vmatmul.bf16.gmra.mxu0 %v246
  %v415 = vpop.f32.mrf.mxu0
  %v416 = vadd.f32 %v118, %v415
  %v417 = vpop.f32.mrf.mxu0
  %v418 = vadd.f32 %v119, %v417
  %419 = vmatmul.bf16.gmra.mxu0 %v248
  %v420 = vpop.f32.mrf.mxu0
  %v421 = vadd.f32 %v120, %v420
  %v422 = vpop.f32.mrf.mxu0
  %v423 = vadd.f32 %v121, %v422
  %424 = vmatmul.bf16.gmra.mxu0 %v250
  %v425 = vpop.f32.mrf.mxu0
  %v426 = vadd.f32 %v122, %v425
  %v427 = vpop.f32.mrf.mxu0
  %v428 = vadd.f32 %v123, %v427
  %429 = vmatmul.bf16.gmra.mxu0 %v252
  %v430 = vpop.f32.mrf.mxu0
  %v431 = vadd.f32 %v124, %v430
  %v432 = vpop.f32.mrf.mxu0
  %v433 = vadd.f32 %v125, %v432
  %434 = vmatmul.bf16.gmra.mxu0 %v254
  %v435 = vpop.f32.mrf.mxu0
  %v436 = vadd.f32 %v126, %v435
  %v437 = vpop.f32.mrf.mxu0
  %v438 = vadd.f32 %v127, %v437
  %439 = vmatmul.bf16.gmra.mxu0 %v256
  %v440 = vpop.f32.mrf.mxu0
  %v441 = vadd.f32 %v128, %v440
  %v442 = vpop.f32.mrf.mxu0
  %v443 = vadd.f32 %v129, %v442
  %444 = vmatmul.bf16.gmra.mxu0 %v258
  %v445 = vpop.f32.mrf.mxu0
  %v446 = vadd.f32 %v130, %v445
  %v447 = vpop.f32.mrf.mxu0
  %v448 = vadd.f32 %v131, %v447
  %449 = vmatmul.bf16.gmra.mxu0 %v260
  %v450 = vpop.f32.mrf.mxu0
  %v451 = vadd.f32 %v132, %v450
  %v452 = vpop.f32.mrf.mxu0
  %v453 = vadd.f32 %v133, %v452
  %454 = vmatmul.bf16.gmra.mxu0 %v262
  %v455 = vpop.f32.mrf.mxu0
  %v456 = vadd.f32 %v134, %v455
  %v457 = vpop.f32.mrf.mxu0
  %v458 = vadd.f32 %v135, %v457
  %459 = vmatmul.bf16.gmra.mxu0 %v264
  %v460 = vpop.f32.mrf.mxu0
  %v461 = vadd.f32 %v136, %v460
  %v462 = vpop.f32.mrf.mxu0
  %v463 = vadd.f32 %v137, %v462
  %464 = vmatmul.bf16.gmra.mxu0 %v266
  %v465 = vpop.f32.mrf.mxu0
  %v466 = vadd.f32 %v138, %v465
  %v467 = vpop.f32.mrf.mxu0
  %v468 = vadd.f32 %v139, %v467
  %469 = vmatmul.bf16.gmra.mxu0 %v268
  %v470 = vpop.f32.mrf.mxu0
  %v471 = vadd.f32 %v140, %v470
  %v472 = vpop.f32.mrf.mxu0
  %v473 = vadd.f32 %v141, %v472
  %474 = vmatmul.bf16.gmra.mxu0 %v270
  %v475 = vpop.f32.mrf.mxu0
  %v476 = vadd.f32 %v142, %v475
  %v477 = vpop.f32.mrf.mxu0
  %v478 = vadd.f32 %v143, %v477
  %479 = vmatmul.bf16.gmra.mxu0 %v272
  %v480 = vpop.f32.mrf.mxu0
  %v481 = vadd.f32 %v144, %v480
  %v482 = vpop.f32.mrf.mxu0
  %v483 = vadd.f32 %v145, %v482
  %484 = vmatmul.bf16.gmra.mxu0 %v274
  %v485 = vpop.f32.mrf.mxu0
  %v486 = vadd.f32 %v146, %v485
  %v487 = vpop.f32.mrf.mxu0
  %v488 = vadd.f32 %v147, %v487
  %489 = vmatmul.bf16.gmra.mxu0 %v276
  %v490 = vpop.f32.mrf.mxu0
  %v491 = vadd.f32 %v148, %v490
  %v492 = vpop.f32.mrf.mxu0
  %v493 = vadd.f32 %v149, %v492
  %494 = vdwg.mxu0
  %495 = vmatpush.bf16.msra.mxu0 %v389
  %496 = vmatpush.bf16.msra.mxu0 %v388
  %497 = vmatpush.bf16.msra.mxu0 %v387
  %498 = vmatpush.bf16.msra.mxu0 %v386
  %499 = vmatpush.bf16.msra.mxu0 %v385
  %500 = vmatpush.bf16.msra.mxu0 %v384
  %501 = vmatpush.bf16.msra.mxu0 %v383
  %502 = vmatpush.bf16.msra.mxu0 %v382
  %503 = vmatmul.bf16.gmra.mxu0 %v247
  %v504 = vpop.f32.mrf.mxu0
  %v505 = vadd.f32 %v416, %v504
  %v506 = vpop.f32.mrf.mxu0
  %v507 = vadd.f32 %v418, %v506
  %508 = vmatmul.bf16.gmra.mxu0 %v249
  %v509 = vpop.f32.mrf.mxu0
  %v510 = vadd.f32 %v421, %v509
  %v511 = vpop.f32.mrf.mxu0
  %v512 = vadd.f32 %v423, %v511
  %513 = vmatmul.bf16.gmra.mxu0 %v251
  %v514 = vpop.f32.mrf.mxu0
  %v515 = vadd.f32 %v426, %v514
  %v516 = vpop.f32.mrf.mxu0
  %v517 = vadd.f32 %v428, %v516
  %518 = vmatmul.bf16.gmra.mxu0 %v253
  %v519 = vpop.f32.mrf.mxu0
  %v520 = vadd.f32 %v431, %v519
  %v521 = vpop.f32.mrf.mxu0
  %v522 = vadd.f32 %v433, %v521
  %523 = vmatmul.bf16.gmra.mxu0 %v255
  %v524 = vpop.f32.mrf.mxu0
  %v525 = vadd.f32 %v436, %v524
  %v526 = vpop.f32.mrf.mxu0
  %v527 = vadd.f32 %v438, %v526
  %528 = vmatmul.bf16.gmra.mxu0 %v257
  %v529 = vpop.f32.mrf.mxu0
  %v530 = vadd.f32 %v441, %v529
  %v531 = vpop.f32.mrf.mxu0
  %v532 = vadd.f32 %v443, %v531
  %533 = vmatmul.bf16.gmra.mxu0 %v259
  %v534 = vpop.f32.mrf.mxu0
  %v535 = vadd.f32 %v446, %v534
  %v536 = vpop.f32.mrf.mxu0
  %v537 = vadd.f32 %v448, %v536
  %538 = vmatmul.bf16.gmra.mxu0 %v261
  %v539 = vpop.f32.mrf.mxu0
  %v540 = vadd.f32 %v451, %v539
  %v541 = vpop.f32.mrf.mxu0
  %v542 = vadd.f32 %v453, %v541
  %543 = vmatmul.bf16.gmra.mxu0 %v263
  %v544 = vpop.f32.mrf.mxu0
  %v545 = vadd.f32 %v456, %v544
  %v546 = vpop.f32.mrf.mxu0
  %v547 = vadd.f32 %v458, %v546
  %548 = vmatmul.bf16.gmra.mxu0 %v265
  %v549 = vpop.f32.mrf.mxu0
  %v550 = vadd.f32 %v461, %v549
  %v551 = vpop.f32.mrf.mxu0
  %v552 = vadd.f32 %v463, %v551
  %553 = vmatmul.bf16.gmra.mxu0 %v267
  %v554 = vpop.f32.mrf.mxu0
  %v555 = vadd.f32 %v466, %v554
  %v556 = vpop.f32.mrf.mxu0
  %v557 = vadd.f32 %v468, %v556
  %558 = vmatmul.bf16.gmra.mxu0 %v269
  %v559 = vpop.f32.mrf.mxu0
  %v560 = vadd.f32 %v471, %v559
  %v561 = vpop.f32.mrf.mxu0
  %v562 = vadd.f32 %v473, %v561
  %563 = vmatmul.bf16.gmra.mxu0 %v271
  %v564 = vpop.f32.mrf.mxu0
  %v565 = vadd.f32 %v476, %v564
  %v566 = vpop.f32.mrf.mxu0
  %v567 = vadd.f32 %v478, %v566
  %568 = vmatmul.bf16.gmra.mxu0 %v273
  %v569 = vpop.f32.mrf.mxu0
  %v570 = vadd.f32 %v481, %v569
  %v571 = vpop.f32.mrf.mxu0
  %v572 = vadd.f32 %v483, %v571
  %573 = vmatmul.bf16.gmra.mxu0 %v275
  %v574 = vpop.f32.mrf.mxu0
  %v575 = vadd.f32 %v486, %v574
  %v576 = vpop.f32.mrf.mxu0
  %v577 = vadd.f32 %v488, %v576
  %578 = vmatmul.bf16.gmra.mxu0 %v277
  %v579 = vpop.f32.mrf.mxu0
  %v580 = vadd.f32 %v491, %v579
  %v581 = vpop.f32.mrf.mxu0
  %v582 = vadd.f32 %v493, %v581
  %583 = vdwg.mxu0
  %v584 = vpack.c.bf16 %v507, %v505
  %v585 = vpack.c.bf16 %v512, %v510
  %v586 = vpack.c.bf16 %v517, %v515
  %v587 = vpack.c.bf16 %v522, %v520
  %v588 = vpack.c.bf16 %v527, %v525
  %v589 = vpack.c.bf16 %v532, %v530
  %v590 = vpack.c.bf16 %v537, %v535
  %v591 = vpack.c.bf16 %v542, %v540
  %v592 = vpack.c.bf16 %v547, %v545
  %v593 = vpack.c.bf16 %v552, %v550
  %v594 = vpack.c.bf16 %v557, %v555
  %v595 = vpack.c.bf16 %v562, %v560
  %v596 = vpack.c.bf16 %v567, %v565
  %v597 = vpack.c.bf16 %v572, %v570
  %v598 = vpack.c.bf16 %v577, %v575
  %v599 = vpack.c.bf16 %v582, %v580
  %v600 = vld [vmem:[%s2] sm:$0xf]
  %v601 = vld [vmem:[%s2 + $0x4] sm:$0xf]
  %v602 = vld [vmem:[%s2 + $0x8] sm:$0xf]
  %v603 = vld [vmem:[%s2 + $0xc] sm:$0xf]
  %v604 = vld [vmem:[%s2 + $0x10] sm:$0xf]
  %v605 = vld [vmem:[%s2 + $0x14] sm:$0xf]
  %v606 = vld [vmem:[%s2 + $0x18] sm:$0xf]
  %v607 = vld [vmem:[%s2 + $0x1c] sm:$0xf]
  %v608 = vld [vmem:[%s2 + $0x20] sm:$0xf]
  %v609 = vld [vmem:[%s2 + $0x24] sm:$0xf]
  %v610 = vld [vmem:[%s2 + $0x28] sm:$0xf]
  %v611 = vld [vmem:[%s2 + $0x2c] sm:$0xf]
  %v612 = vld [vmem:[%s2 + $0x30] sm:$0xf]
  %v613 = vld [vmem:[%s2 + $0x34] sm:$0xf]
  %v614 = vld [vmem:[%s2 + $0x38] sm:$0xf]
  %v615 = vld [vmem:[%s2 + $0x3c] sm:$0xf]
  %v616 = vld [vmem:[%s3] sm:$0x1]
  %v618 = vperm.slane %v616, 0
  %v636 = vunpack.c.l.b16 %v600
  %v637 = vunpack.c.l.b16 %v601
  %v638 = vunpack.c.l.b16 %v602
  %v639 = vunpack.c.l.b16 %v603
  %v640 = vunpack.c.l.b16 %v604
  %v641 = vunpack.c.l.b16 %v605
  %v642 = vunpack.c.l.b16 %v606
  %v643 = vunpack.c.l.b16 %v607
  %v644 = vunpack.c.l.b16 %v608
  %v645 = vunpack.c.l.b16 %v609
  %v646 = vunpack.c.l.b16 %v610
  %v647 = vunpack.c.l.b16 %v611
  %v648 = vunpack.c.l.b16 %v612
  %v649 = vunpack.c.l.b16 %v613
  %v650 = vunpack.c.l.b16 %v614
  %v651 = vunpack.c.l.b16 %v615
  %v652 = vpack.c.b16 %v637, %v636
  %v653 = vpack.c.b16 %v639, %v638
  %v654 = vpack.c.b16 %v641, %v640
  %v655 = vpack.c.b16 %v643, %v642
  %v656 = vpack.c.b16 %v645, %v644
  %v657 = vpack.c.b16 %v647, %v646
  %v658 = vpack.c.b16 %v649, %v648
  %v659 = vpack.c.b16 %v651, %v650
  %668 = vmatpush.bf16.msra.mxu0 %v659
  %669 = vmatpush.bf16.msra.mxu0 %v658
  %670 = vmatpush.bf16.msra.mxu0 %v657
  %671 = vmatpush.bf16.msra.mxu0 %v656
  %672 = vmatpush.bf16.msra.mxu0 %v655
  %673 = vmatpush.bf16.msra.mxu0 %v654
  %674 = vmatpush.bf16.msra.mxu0 %v653
  %675 = vmatpush.bf16.msra.mxu0 %v652
  %676 = vmatmul.bf16.gmra.mxu0 %v584
  %v677 = vpop.f32.mrf.mxu0
  %v678 = vadd.f32 %v618, %v677
  %v679 = vpop.f32.mrf.mxu0
  %v680 = vadd.f32 %v618, %v679
  %681 = vmatmul.bf16.gmra.mxu0 %v585
  %v682 = vpop.f32.mrf.mxu0
  %v683 = vadd.f32 %v618, %v682
  %v684 = vpop.f32.mrf.mxu0
  %v685 = vadd.f32 %v618, %v684
  %686 = vmatmul.bf16.gmra.mxu0 %v586
  %v687 = vpop.f32.mrf.mxu0
  %v688 = vadd.f32 %v618, %v687
  %v689 = vpop.f32.mrf.mxu0
  %v690 = vadd.f32 %v618, %v689
  %691 = vmatmul.bf16.gmra.mxu0 %v587
  %v692 = vpop.f32.mrf.mxu0
  %v693 = vadd.f32 %v618, %v692
  %v694 = vpop.f32.mrf.mxu0
  %v695 = vadd.f32 %v618, %v694
  %696 = vmatmul.bf16.gmra.mxu0 %v588
  %v697 = vpop.f32.mrf.mxu0
  %v698 = vadd.f32 %v618, %v697
  %v699 = vpop.f32.mrf.mxu0
  %v700 = vadd.f32 %v618, %v699
  %701 = vmatmul.bf16.gmra.mxu0 %v589
  %v702 = vpop.f32.mrf.mxu0
  %v703 = vadd.f32 %v618, %v702
  %v704 = vpop.f32.mrf.mxu0
  %v705 = vadd.f32 %v618, %v704
  %706 = vmatmul.bf16.gmra.mxu0 %v590
  %v707 = vpop.f32.mrf.mxu0
  %v708 = vadd.f32 %v618, %v707
  %v709 = vpop.f32.mrf.mxu0
  %v710 = vadd.f32 %v618, %v709
  %711 = vmatmul.bf16.gmra.mxu0 %v591
  %v712 = vpop.f32.mrf.mxu0
  %v713 = vadd.f32 %v618, %v712
  %v714 = vpop.f32.mrf.mxu0
  %v715 = vadd.f32 %v618, %v714
  %716 = vmatmul.bf16.gmra.mxu0 %v592
  %v717 = vpop.f32.mrf.mxu0
  %v718 = vadd.f32 %v618, %v717
  %v719 = vpop.f32.mrf.mxu0
  %v720 = vadd.f32 %v618, %v719
  %721 = vmatmul.bf16.gmra.mxu0 %v593
  %v722 = vpop.f32.mrf.mxu0
  %v723 = vadd.f32 %v618, %v722
  %v724 = vpop.f32.mrf.mxu0
  %v725 = vadd.f32 %v618, %v724
  %726 = vmatmul.bf16.gmra.mxu0 %v594
  %v727 = vpop.f32.mrf.mxu0
  %v728 = vadd.f32 %v618, %v727
  %v729 = vpop.f32.mrf.mxu0
  %v730 = vadd.f32 %v618, %v729
  %731 = vmatmul.bf16.gmra.mxu0 %v595
  %v732 = vpop.f32.mrf.mxu0
  %v733 = vadd.f32 %v618, %v732
  %v734 = vpop.f32.mrf.mxu0
  %v735 = vadd.f32 %v618, %v734
  %736 = vmatmul.bf16.gmra.mxu0 %v596
  %v737 = vpop.f32.mrf.mxu0
  %v738 = vadd.f32 %v618, %v737
  %v739 = vpop.f32.mrf.mxu0
  %v740 = vadd.f32 %v618, %v739
  %741 = vmatmul.bf16.gmra.mxu0 %v597
  %v742 = vpop.f32.mrf.mxu0
  %v743 = vadd.f32 %v618, %v742
  %v744 = vpop.f32.mrf.mxu0
  %v745 = vadd.f32 %v618, %v744
  %746 = vmatmul.bf16.gmra.mxu0 %v598
  %v747 = vpop.f32.mrf.mxu0
  %v748 = vadd.f32 %v618, %v747
  %v749 = vpop.f32.mrf.mxu0
  %v750 = vadd.f32 %v618, %v749
  %751 = vmatmul.bf16.gmra.mxu0 %v599
  %v752 = vpop.f32.mrf.mxu0
  %v753 = vadd.f32 %v618, %v752
  %v754 = vpop.f32.mrf.mxu0
  %v755 = vadd.f32 %v618, %v754
  %756 = vdwg.mxu0
  %vm757 = vcmp.ge.f32.partialorder %v678, 0.0
  %vm758 = vcmp.ge.f32.partialorder %v680, 0.0
  %vm759 = vcmp.ge.f32.partialorder %v683, 0.0
  %vm760 = vcmp.ge.f32.partialorder %v685, 0.0
  %vm761 = vcmp.ge.f32.partialorder %v688, 0.0
  %vm762 = vcmp.ge.f32.partialorder %v690, 0.0
  %vm763 = vcmp.ge.f32.partialorder %v693, 0.0
  %vm764 = vcmp.ge.f32.partialorder %v695, 0.0
  %vm765 = vcmp.ge.f32.partialorder %v698, 0.0
  %vm766 = vcmp.ge.f32.partialorder %v700, 0.0
  %vm767 = vcmp.ge.f32.partialorder %v703, 0.0
  %vm768 = vcmp.ge.f32.partialorder %v705, 0.0
  %vm769 = vcmp.ge.f32.partialorder %v708, 0.0
  %vm770 = vcmp.ge.f32.partialorder %v710, 0.0
  %vm771 = vcmp.ge.f32.partialorder %v713, 0.0
  %vm772 = vcmp.ge.f32.partialorder %v715, 0.0
  %vm773 = vcmp.ge.f32.partialorder %v718, 0.0
  %vm774 = vcmp.ge.f32.partialorder %v720, 0.0
  %vm775 = vcmp.ge.f32.partialorder %v723, 0.0
  %vm776 = vcmp.ge.f32.partialorder %v725, 0.0
  %vm777 = vcmp.ge.f32.partialorder %v728, 0.0
  %vm778 = vcmp.ge.f32.partialorder %v730, 0.0
  %vm779 = vcmp.ge.f32.partialorder %v733, 0.0
  %vm780 = vcmp.ge.f32.partialorder %v735, 0.0
  %vm781 = vcmp.ge.f32.partialorder %v738, 0.0
  %vm782 = vcmp.ge.f32.partialorder %v740, 0.0
  %vm783 = vcmp.ge.f32.partialorder %v743, 0.0
  %vm784 = vcmp.ge.f32.partialorder %v745, 0.0
  %vm785 = vcmp.ge.f32.partialorder %v748, 0.0
  %vm786 = vcmp.ge.f32.partialorder %v750, 0.0
  %vm787 = vcmp.ge.f32.partialorder %v753, 0.0
  %vm788 = vcmp.ge.f32.partialorder %v755, 0.0
  %v789 = vmul.f32 %v678, 0.2
  %v790 = vmul.f32 %v680, 0.2
  %v791 = vmul.f32 %v683, 0.2
  %v792 = vmul.f32 %v685, 0.2
  %v793 = vmul.f32 %v688, 0.2
  %v794 = vmul.f32 %v690, 0.2
  %v795 = vmul.f32 %v693, 0.2
  %v796 = vmul.f32 %v695, 0.2
  %v797 = vmul.f32 %v698, 0.2
  %v798 = vmul.f32 %v700, 0.2
  %v799 = vmul.f32 %v703, 0.2
  %v800 = vmul.f32 %v705, 0.2
  %v801 = vmul.f32 %v708, 0.2
  %v802 = vmul.f32 %v710, 0.2
  %v803 = vmul.f32 %v713, 0.2
  %v804 = vmul.f32 %v715, 0.2
  %v805 = vmul.f32 %v718, 0.2
  %v806 = vmul.f32 %v720, 0.2
  %v807 = vmul.f32 %v723, 0.2
  %v808 = vmul.f32 %v725, 0.2
  %v809 = vmul.f32 %v728, 0.2
  %v810 = vmul.f32 %v730, 0.2
  %v811 = vmul.f32 %v733, 0.2
  %v812 = vmul.f32 %v735, 0.2
  %v813 = vmul.f32 %v738, 0.2
  %v814 = vmul.f32 %v740, 0.2
  %v815 = vmul.f32 %v743, 0.2
  %v816 = vmul.f32 %v745, 0.2
  %v817 = vmul.f32 %v748, 0.2
  %v818 = vmul.f32 %v750, 0.2
  %v819 = vmul.f32 %v753, 0.2
  %v820 = vmul.f32 %v755, 0.2
  %v821 = vsel %vm757, %v678, %v789
  %v822 = vsel %vm758, %v680, %v790
  %v823 = vsel %vm759, %v683, %v791
  %v824 = vsel %vm760, %v685, %v792
  %v825 = vsel %vm761, %v688, %v793
  %v826 = vsel %vm762, %v690, %v794
  %v827 = vsel %vm763, %v693, %v795
  %v828 = vsel %vm764, %v695, %v796
  %v829 = vsel %vm765, %v698, %v797
  %v830 = vsel %vm766, %v700, %v798
  %v831 = vsel %vm767, %v703, %v799
  %v832 = vsel %vm768, %v705, %v800
  %v833 = vsel %vm769, %v708, %v801
  %v834 = vsel %vm770, %v710, %v802
  %v835 = vsel %vm771, %v713, %v803
  %v836 = vsel %vm772, %v715, %v804
  %v837 = vsel %vm773, %v718, %v805
  %v838 = vsel %vm774, %v720, %v806
  %v839 = vsel %vm775, %v723, %v807
  %v840 = vsel %vm776, %v725, %v808
  %v841 = vsel %vm777, %v728, %v809
  %v842 = vsel %vm778, %v730, %v810
  %v843 = vsel %vm779, %v733, %v811
  %v844 = vsel %vm780, %v735, %v812
  %v845 = vsel %vm781, %v738, %v813
  %v846 = vsel %vm782, %v740, %v814
  %v847 = vsel %vm783, %v743, %v815
  %v848 = vsel %vm784, %v745, %v816
  %v849 = vsel %vm785, %v748, %v817
  %v850 = vsel %vm786, %v750, %v818
  %v851 = vsel %vm787, %v753, %v819
  %v852 = vsel %vm788, %v755, %v820
  %853 = vst [vmem:[%s4] sm:$0xff] %v821
  %854 = vst [vmem:[%s4 + $0x8] sm:$0xff] %v822
  %855 = vst [vmem:[%s4 + $0x10] sm:$0xff] %v823
  %856 = vst [vmem:[%s4 + $0x18] sm:$0xff] %v824
  %857 = vst [vmem:[%s4 + $0x20] sm:$0xff] %v825
  %858 = vst [vmem:[%s4 + $0x28] sm:$0xff] %v826
  %859 = vst [vmem:[%s4 + $0x30] sm:$0xff] %v827
  %860 = vst [vmem:[%s4 + $0x38] sm:$0xff] %v828
  %861 = vst [vmem:[%s4 + $0x40] sm:$0xff] %v829
  %862 = vst [vmem:[%s4 + $0x48] sm:$0xff] %v830
  %863 = vst [vmem:[%s4 + $0x50] sm:$0xff] %v831
  %864 = vst [vmem:[%s4 + $0x58] sm:$0xff] %v832
  %865 = vst [vmem:[%s4 + $0x60] sm:$0xff] %v833
  %866 = vst [vmem:[%s4 + $0x68] sm:$0xff] %v834
  %867 = vst [vmem:[%s4 + $0x70] sm:$0xff] %v835
  %868 = vst [vmem:[%s4 + $0x78] sm:$0xff] %v836
  %869 = vst [vmem:[%s4 + $0x80] sm:$0xff] %v837
  %870 = vst [vmem:[%s4 + $0x88] sm:$0xff] %v838
  %871 = vst [vmem:[%s4 + $0x90] sm:$0xff] %v839
  %872 = vst [vmem:[%s4 + $0x98] sm:$0xff] %v840
  %873 = vst [vmem:[%s4 + $0xa0] sm:$0xff] %v841
  %874 = vst [vmem:[%s4 + $0xa8] sm:$0xff] %v842
  %875 = vst [vmem:[%s4 + $0xb0] sm:$0xff] %v843
  %876 = vst [vmem:[%s4 + $0xb8] sm:$0xff] %v844
  %877 = vst [vmem:[%s4 + $0xc0] sm:$0xff] %v845
  %878 = vst [vmem:[%s4 + $0xc8] sm:$0xff] %v846
  %879 = vst [vmem:[%s4 + $0xd0] sm:$0xff] %v847
  %880 = vst [vmem:[%s4 + $0xd8] sm:$0xff] %v848
  %881 = vst [vmem:[%s4 + $0xe0] sm:$0xff] %v849
  %882 = vst [vmem:[%s4 + $0xe8] sm:$0xff] %v850
  %883 = vst [vmem:[%s4 + $0xf0] sm:$0xff] %v851
  %884 = vst [vmem:[%s4 + $0xf8] sm:$0xff] %v852
  // Predicated region
  $region18: #{dhcf2_forward.2} parent=0 // pred_check
    _
  $region19: #{dhcf2_forward.2} parent=0 // pred_check_branch
    %886 = sbr.rel (0) target = $region21
  $region20: #{dhcf2_forward.2} parent=0 // pred_region
    _
  $region21: #{dhcf2_forward.2} parent=0 // pred_fallthru
    _
  // Predicated region
  $region22: #{dhcf2_forward.2} parent=0 // pred_check
    _
  $region23: #{dhcf2_forward.2} parent=0 // pred_check_branch
    %888 = sbr.rel (0) target = $region25
  $region24: #{dhcf2_forward.2} parent=0 // pred_region
    _
  $region25: #{dhcf2_forward.2} parent=0 // pred_fallthru
    _

</llo_original>
